<compile_context>
chip_gen: v7x
topology: tpu7x:2x2x1
jax: 0.10.0
libtpu: 0.0.40
codegen_flags: <defaults>
</compile_context>

<pallas_src>
import jax
import jax.numpy as jnp
from jax import lax
from jax.experimental import pallas as pl
from jax.experimental.pallas import tpu as pltpu


def _vergd_kernel(gd_ref, segid_ref,                       # int32 one-hot sources
                  repr_ref, w1_ref, b1_ref, w2_ref, b2_ref,  # padded params
                  out_ref):                                  # [G_pad, D_pad] resident
    e = pl.program_id(0)
    n_steps = pl.num_programs(0)

    e_blk = gd_ref.shape[0]
    n_pad = repr_ref.shape[0]
    g_pad = out_ref.shape[0]

    @pl.when(e == 0)
    def _():
        out_ref[...] = jnp.zeros_like(out_ref)

    # One-hot gather matrix P[e, n] = (gd[e] == n); padded gd entries are -1 -> zero row.
    gd_col = gd_ref[...]                                           # (e_blk, 1) int32
    node_iota = lax.broadcasted_iota(jnp.int32, (e_blk, n_pad), 1)
    p_mat = (gd_col == node_iota).astype(jnp.float32)              # (e_blk, n_pad)

    # One-hot scatter matrix S^T[g, e] = (seg_id[e] == g); padded seg ids are -1 -> zero col.
    seg_row = segid_ref[...]                                       # (1, e_blk) int32
    grp_iota = lax.broadcasted_iota(jnp.int32, (g_pad, e_blk), 0)
    s_t = (seg_row == grp_iota).astype(jnp.float32)                # (g_pad, e_blk)

    # Segment-sum of this block of geodesic entries, entirely on the MXU.
    gathered = jnp.dot(p_mat, repr_ref[...], preferred_element_type=jnp.float32)
    out_ref[...] += jnp.dot(s_t, gathered, preferred_element_type=jnp.float32)

    # After the last E-block, run mlp_gd_process in-place on the accumulated [G, D].
    @pl.when(e == n_steps - 1)
    def _():
        seg = out_ref[...]
        h = jnp.dot(seg, w1_ref[...], preferred_element_type=jnp.float32) + b1_ref[...]
        h = jnp.maximum(h, 0.0)
        out_ref[...] = (jnp.dot(h, w2_ref[...], preferred_element_type=jnp.float32)
                        + b2_ref[...])


def _round_up(x, m):
    return ((x + m - 1) // m) * m


def vergd_transform(repr_, gd, gd_len, w1, b1, w2, b2, *, e_block=128):
    """Pallas implementation of VerGDTransform.forward (gd_deg=None, embs=None)."""
    N, D = repr_.shape
    G = int(gd_len.shape[0])
    H = int(w1.shape[1])          # = 2 * D
    E = int(gd.shape[0])

    # Lane/sublane-dense padded sizes.
    D_pad = _round_up(D, 128)
    N_pad = _round_up(N, 128)
    H_pad = _round_up(H, 128)
    G_pad = _round_up(G, 8)
    E_pad = _round_up(max(E, 1), e_block)

    f32 = jnp.float32
    repr_p = jnp.zeros((N_pad, D_pad), f32).at[:N, :D].set(repr_.astype(f32))
    w1_p = jnp.zeros((D_pad, H_pad), f32).at[:D, :H].set(w1.astype(f32))
    b1_p = jnp.zeros((1, H_pad), f32).at[0, :H].set(b1.astype(f32))
    w2_p = jnp.zeros((H_pad, D_pad), f32).at[:H, :D].set(w2.astype(f32))
    b2_p = jnp.zeros((1, D_pad), f32).at[0, :D].set(b2.astype(f32))

    # count_to_group_index(gd_len): segment id per geodesic entry.
    seg_id = jnp.repeat(jnp.arange(G, dtype=jnp.int32),
                        gd_len.astype(jnp.int32), total_repeat_length=E)
    # Padded entries -> -1 so their one-hot rows/columns are all zero.
    gd_p = jnp.full((E_pad, 1), -1, jnp.int32).at[:E, 0].set(gd.astype(jnp.int32))
    seg_p = jnp.full((1, E_pad), -1, jnp.int32).at[0, :E].set(seg_id)

    grid = (E_pad // e_block,)

    out_pad = pl.pallas_call(
        _vergd_kernel,
        out_shape=jax.ShapeDtypeStruct((G_pad, D_pad), jnp.float32),
        grid=grid,
        in_specs=[
            pl.BlockSpec((e_block, 1), lambda e: (e, 0)),        # gd        (E_pad, 1)
            pl.BlockSpec((1, e_block), lambda e: (0, e)),        # seg_id    (1, E_pad)
            pl.BlockSpec((N_pad, D_pad), lambda e: (0, 0)),      # repr
            pl.BlockSpec((D_pad, H_pad), lambda e: (0, 0)),      # W1
            pl.BlockSpec((1, H_pad), lambda e: (0, 0)),          # b1
            pl.BlockSpec((H_pad, D_pad), lambda e: (0, 0)),      # W2
            pl.BlockSpec((1, D_pad), lambda e: (0, 0)),          # b2
        ],
        out_specs=pl.BlockSpec((G_pad, D_pad), lambda e: (0, 0)),  # resident accumulator
        compiler_params=pltpu.CompilerParams(
            dimension_semantics=("arbitrary",),   # output accumulates across the E axis
        ),
    )(gd_p, seg_p, repr_p, w1_p, b1_p, w2_p, b2_p)

    return out_pad[:G, :D]


def _reference(repr_, gd, gd_len, w1, b1, w2, b2):
    G = gd_len.shape[0]
    seg_id = jnp.repeat(jnp.arange(G), gd_len, total_repeat_length=int(gd.shape[0]))
    seg = jax.ops.segment_sum(repr_[gd], seg_id, num_segments=G)
    h = jnp.maximum(seg @ w1 + b1, 0.0)
    return h @ w2 + b2


if __name__ == "__main__":
    key = jax.random.PRNGKey(0)
    k_repr, k_gd, k_w1, k_b1, k_w2, k_b2 = jax.random.split(key, 6)

    N = 64          # number of graph nodes
    D = 32          # emb_dim
    G = 8           # number of geodesic groups (links)

    # sums to E = 256 -> two 128-entry E-blocks (exercises cross-step accumulation)
    gd_len = jnp.array([37, 5, 22, 71, 1, 44, 60, 16], dtype=jnp.int32)
    E = int(gd_len.sum())

    repr_ = jax.random.normal(k_repr, (N, D), dtype=jnp.float32)
    gd = jax.random.randint(k_gd, (E,), 0, N, dtype=jnp.int32)

    # mlp_gd_process = MLPLayers(2, h_units=[D, 2*D, D]) : Linear -> ReLU -> Linear
    w1 = jax.random.normal(k_w1, (D, 2 * D), dtype=jnp.float32) * (1.0 / jnp.sqrt(D))
    b1 = jax.random.normal(k_b1, (2 * D,), dtype=jnp.float32) * 0.01
    w2 = jax.random.normal(k_w2, (2 * D, D), dtype=jnp.float32) * (1.0 / jnp.sqrt(2 * D))
    b2 = jax.random.normal(k_b2, (D,), dtype=jnp.float32) * 0.01

    out = vergd_transform(repr_, gd, gd_len, w1, b1, w2, b2)
    out = jax.block_until_ready(out)

    ref = _reference(repr_, gd, gd_len, w1, b1, w2, b2)
    assert out.shape == (G, D)
    assert jnp.allclose(out, ref, rtol=1e-4, atol=1e-4), "mismatch vs reference"

    print("KERNEL_OK")
</pallas_src>

<mosaic_0001>
module attributes {stable_mosaic.version = 11 : i64} {
  func.func @_vergd_kernel(%arg0: i32, %arg1: memref<128x1xi32, #tpu.memory_space<vmem>>, %arg2: memref<1x128xi32, #tpu.memory_space<vmem>>, %arg3: memref<128x128xf32, #tpu.memory_space<vmem>>, %arg4: memref<128x128xf32, #tpu.memory_space<vmem>>, %arg5: memref<1x128xf32, #tpu.memory_space<vmem>>, %arg6: memref<128x128xf32, #tpu.memory_space<vmem>>, %arg7: memref<1x128xf32, #tpu.memory_space<vmem>>, %arg8: memref<8x128xf32, #tpu.memory_space<vmem>>) attributes {dimension_semantics = [#tpu.dimension_semantics<arbitrary>], iteration_bounds = array<i64: 2>, scalar_prefetch = 0 : i64, scratch_operands = 0 : i64, tpu.core_type = #tpu.core_type<tc>, window_params = [{transform_indices = @transform_0, window_bounds = array<i64: 128, 1>}, {transform_indices = @transform_1, window_bounds = array<i64: 1, 128>}, {pipeline_mode = #tpu.pipeline_mode<synchronous>, transform_indices = @transform_2, window_bounds = array<i64: 128, 128>}, {pipeline_mode = #tpu.pipeline_mode<synchronous>, transform_indices = @transform_3, window_bounds = array<i64: 128, 128>}, {pipeline_mode = #tpu.pipeline_mode<synchronous>, transform_indices = @transform_4, window_bounds = array<i64: 1, 128>}, {pipeline_mode = #tpu.pipeline_mode<synchronous>, transform_indices = @transform_5, window_bounds = array<i64: 128, 128>}, {pipeline_mode = #tpu.pipeline_mode<synchronous>, transform_indices = @transform_6, window_bounds = array<i64: 1, 128>}, {pipeline_mode = #tpu.pipeline_mode<synchronous>, transform_indices = @transform_7, window_bounds = array<i64: 8, 128>}]} {
    %c0_i32 = arith.constant 0 : i32
    %0 = arith.cmpi eq, %arg0, %c0_i32 : i32
    %1 = arith.extui %0 : i1 to i32
    %c0_i32_0 = arith.constant 0 : i32
    %2 = arith.cmpi ne, %1, %c0_i32_0 : i32
    scf.if %2 {
      %cst_12 = arith.constant 0.000000e+00 : f32
      %24 = vector.broadcast %cst_12 : f32 to vector<8x128xf32>
      %c0_13 = arith.constant 0 : index
      %c0_14 = arith.constant 0 : index
      %25 = vector.load %arg8[%c0_13, %c0_14] : memref<8x128xf32, #tpu.memory_space<vmem>>, vector<8x128xf32>
      tpu.vector_store %arg8[%c0_13, %c0_14], %24 {strides = array<i32>} : memref<8x128xf32, #tpu.memory_space<vmem>>, vector<8x128xf32>,
    } else {
    }
    %c0 = arith.constant 0 : index
    %c0_1 = arith.constant 0 : index
    %3 = vector.load %arg1[%c0, %c0_1] : memref<128x1xi32, #tpu.memory_space<vmem>>, vector<128x1xi32>
    %4 = tpu.iota {dimensions = array<i32: 1>} : vector<128x128xi32>
    %5 = vector.broadcast %3 : vector<128x1xi32> to vector<128x128xi32>
    %6 = arith.cmpi eq, %5, %4 : vector<128x128xi32>
    %7 = arith.extui %6 : vector<128x128xi1> to vector<128x128xi32>
    %8 = arith.sitofp %7 : vector<128x128xi32> to vector<128x128xf32>
    %c0_2 = arith.constant 0 : index
    %c0_3 = arith.constant 0 : index
    %9 = vector.load %arg2[%c0_2, %c0_3] : memref<1x128xi32, #tpu.memory_space<vmem>>, vector<1x128xi32>
    %10 = tpu.iota {dimensions = array<i32: 0>} : vector<8x128xi32>
    %11 = vector.broadcast %9 : vector<1x128xi32> to vector<8x128xi32>
    %12 = arith.cmpi eq, %11, %10 : vector<8x128xi32>
    %13 = arith.extui %12 : vector<8x128xi1> to vector<8x128xi32>
    %14 = arith.sitofp %13 : vector<8x128xi32> to vector<8x128xf32>
    %c0_4 = arith.constant 0 : index
    %c0_5 = arith.constant 0 : index
    %15 = vector.load %arg3[%c0_4, %c0_5] : memref<128x128xf32, #tpu.memory_space<vmem>>, vector<128x128xf32>
    %cst = arith.constant dense<0.000000e+00> : vector<128x128xf32>
    %16 = tpu.matmul %8, %15, %cst {dimension_numbers = #tpu.dot_dimension_numbers<[1], [0], [0], [1], [0, 0, 1, 1], [], []>} : vector<128x128xf32>, vector<128x128xf32>, vector<128x128xf32> -> vector<128x128xf32>
    %c0_6 = arith.constant 0 : index
    %c0_7 = arith.constant 0 : index
    %17 = vector.load %arg8[%c0_6, %c0_7] : memref<8x128xf32, #tpu.memory_space<vmem>>, vector<8x128xf32>
    %cst_8 = arith.constant dense<0.000000e+00> : vector<8x128xf32>
    %18 = tpu.matmul %14, %16, %cst_8 {dimension_numbers = #tpu.dot_dimension_numbers<[1], [0], [0], [1], [0, 0, 1, 1], [], []>} : vector<8x128xf32>, vector<128x128xf32>, vector<8x128xf32> -> vector<8x128xf32>
    %19 = arith.addf %17, %18 : vector<8x128xf32>
    %c0_9 = arith.constant 0 : index
    %c0_10 = arith.constant 0 : index
    %20 = vector.load %arg8[%c0_9, %c0_10] : memref<8x128xf32, #tpu.memory_space<vmem>>, vector<8x128xf32>
    tpu.vector_store %arg8[%c0_9, %c0_10], %19 {strides = array<i32>} : memref<8x128xf32, #tpu.memory_space<vmem>>, vector<8x128xf32>,
    %c1_i32 = arith.constant 1 : i32
    %21 = arith.cmpi eq, %arg0, %c1_i32 : i32
    %22 = arith.extui %21 : i1 to i32
    %c0_i32_11 = arith.constant 0 : i32
    %23 = arith.cmpi ne, %22, %c0_i32_11 : i32
    scf.if %23 {
      %c0_12 = arith.constant 0 : index
      %c0_13 = arith.constant 0 : index
      %24 = vector.load %arg8[%c0_12, %c0_13] : memref<8x128xf32, #tpu.memory_space<vmem>>, vector<8x128xf32>
      %c0_14 = arith.constant 0 : index
      %c0_15 = arith.constant 0 : index
      %25 = vector.load %arg4[%c0_14, %c0_15] : memref<128x128xf32, #tpu.memory_space<vmem>>, vector<128x128xf32>
      %cst_16 = arith.constant dense<0.000000e+00> : vector<8x128xf32>
      %26 = tpu.matmul %24, %25, %cst_16 {dimension_numbers = #tpu.dot_dimension_numbers<[1], [0], [0], [1], [0, 0, 1, 1], [], []>} : vector<8x128xf32>, vector<128x128xf32>, vector<8x128xf32> -> vector<8x128xf32>
      %c0_17 = arith.constant 0 : index
      %c0_18 = arith.constant 0 : index
      %27 = vector.load %arg5[%c0_17, %c0_18] : memref<1x128xf32, #tpu.memory_space<vmem>>, vector<1x128xf32>
      %28 = vector.broadcast %27 : vector<1x128xf32> to vector<8x128xf32>
      %29 = arith.addf %26, %28 : vector<8x128xf32>
      %cst_19 = arith.constant 0.000000e+00 : f32
      %30 = vector.broadcast %cst_19 : f32 to vector<8x128xf32>
      %31 = arith.maximumf %29, %30 : vector<8x128xf32>
      %c0_20 = arith.constant 0 : index
      %c0_21 = arith.constant 0 : index
      %32 = vector.load %arg6[%c0_20, %c0_21] : memref<128x128xf32, #tpu.memory_space<vmem>>, vector<128x128xf32>
      %cst_22 = arith.constant dense<0.000000e+00> : vector<8x128xf32>
      %33 = tpu.matmul %31, %32, %cst_22 {dimension_numbers = #tpu.dot_dimension_numbers<[1], [0], [0], [1], [0, 0, 1, 1], [], []>} : vector<8x128xf32>, vector<128x128xf32>, vector<8x128xf32> -> vector<8x128xf32>
      %c0_23 = arith.constant 0 : index
      %c0_24 = arith.constant 0 : index
      %34 = vector.load %arg7[%c0_23, %c0_24] : memref<1x128xf32, #tpu.memory_space<vmem>>, vector<1x128xf32>
      %35 = vector.broadcast %34 : vector<1x128xf32> to vector<8x128xf32>
      %36 = arith.addf %33, %35 : vector<8x128xf32>
      %c0_25 = arith.constant 0 : index
      %c0_26 = arith.constant 0 : index
      %37 = vector.load %arg8[%c0_25, %c0_26] : memref<8x128xf32, #tpu.memory_space<vmem>>, vector<8x128xf32>
      tpu.vector_store %arg8[%c0_25, %c0_26], %36 {strides = array<i32>} : memref<8x128xf32, #tpu.memory_space<vmem>>, vector<8x128xf32>,
    } else {
    }
    return
  }
  func.func @transform_0(%arg0: i32) -> (i32, i32) {
    %c0_i32 = arith.constant 0 : i32
    %c0_i32_0 = arith.constant 0 : i32
    return %arg0, %c0_i32 : i32, i32
  }
  func.func @transform_1(%arg0: i32) -> (i32, i32) {
    %c0_i32 = arith.constant 0 : i32
    %c0_i32_0 = arith.constant 0 : i32
    return %c0_i32, %arg0 : i32, i32
  }
  func.func @transform_2(%arg0: i32) -> (i32, i32) {
    %c0_i32 = arith.constant 0 : i32
    %c0_i32_0 = arith.constant 0 : i32
    %c0_i32_1 = arith.constant 0 : i32
    return %c0_i32, %c0_i32_0 : i32, i32
  }
  func.func @transform_3(%arg0: i32) -> (i32, i32) {
    %c0_i32 = arith.constant 0 : i32
    %c0_i32_0 = arith.constant 0 : i32
    %c0_i32_1 = arith.constant 0 : i32
    return %c0_i32, %c0_i32_0 : i32, i32
  }
  func.func @transform_4(%arg0: i32) -> (i32, i32) {
    %c0_i32 = arith.constant 0 : i32
    %c0_i32_0 = arith.constant 0 : i32
    %c0_i32_1 = arith.constant 0 : i32
    return %c0_i32, %c0_i32_0 : i32, i32
  }
  func.func @transform_5(%arg0: i32) -> (i32, i32) {
    %c0_i32 = arith.constant 0 : i32
    %c0_i32_0 = arith.constant 0 : i32
    %c0_i32_1 = arith.constant 0 : i32
    return %c0_i32, %c0_i32_0 : i32, i32
  }
  func.func @transform_6(%arg0: i32) -> (i32, i32) {
    %c0_i32 = arith.constant 0 : i32
    %c0_i32_0 = arith.constant 0 : i32
    %c0_i32_1 = arith.constant 0 : i32
    return %c0_i32, %c0_i32_0 : i32, i32
  }
  func.func @transform_7(%arg0: i32) -> (i32, i32) {
    %c0_i32 = arith.constant 0 : i32
    %c0_i32_0 = arith.constant 0 : i32
    %c0_i32_1 = arith.constant 0 : i32
    return %c0_i32, %c0_i32_0 : i32, i32
  }
}

</mosaic_0001>

<llo_original>
// kernel: tpu_custom_call.1
$region0: #{tpu_custom_call.1}
  #allocation0 [shape = 'u32[]', space=smem, size = 0x4, offset = 0x4, fixed_abs, tag = 'smem constant byte address 0x4 - core index']
  #allocation1 [shape = 'u32[144,128]{1,0:T(1,128)}', space=vmem, size = 0x12000, scoped, tag = 'internal scratch']
  %s0 = inlined_call_operand.vmem [shape: s32[256,1], index: 0, kind: input, shape index: {}]
  %s1 = inlined_call_operand.vmem [shape: s32[1,256], index: 1, kind: input, shape index: {}]
  %s2 = inlined_call_operand.vmem [shape: f32[128,128], index: 2, kind: input, shape index: {}]
  %s3 = inlined_call_operand.vmem [shape: f32[128,128], index: 3, kind: input, shape index: {}]
  %s4 = inlined_call_operand.vmem [shape: f32[1,128], index: 4, kind: input, shape index: {}]
  %s5 = inlined_call_operand.hbm [shape: f32[128,128], index: 5, kind: input, shape index: {}]
  %s6 = inlined_call_operand.vmem [shape: f32[1,128], index: 6, kind: input, shape index: {}]
  %s7 = inlined_call_operand.hbm [shape: f32[8,128], index: 7, kind: output, shape index: {}]
  %s8 = sld [smem:[#allocation0]]
  $region73: #{tpu_custom_call.1} parent=0
    _
  %s10 = ssub.s32 1, %s8
  %s11 = scalar_select 0, %s10, %s8
  $region1: #{tpu_custom_call.1} parent=0
    #allocation2 [shape = 'u8[65536]{0}', space=vmem, size = 0x10000, scoped, tag = 'input window, operand 5, single buffered']
    #allocation3 [shape = 's32[2]{0}', space=sflag, size = 0x8, scoped, tag = 'scoped memory for tpu_custom_call.1']
    #allocation4 [shape = 's32[2]{0}', space=sflag, size = 0x8, scoped, tag = 'scoped memory for tpu_custom_call.1']
    #allocation5 [shape = 'u8[4096]{0}', space=vmem, size = 0x1000, scoped, tag = 'output window, operand 0, single buffered']
    %12 = vsyncpa [#allocation3], 0
    %13 = vsyncpa [#allocation4], 0
    loop: start=0, step=1, limit=4
    $region2: #{tpu_custom_call.1} parent=1 // loop_pre_header
      _
    $region3: #{tpu_custom_call.1} parent=1 // loop_header
      %s15 = sphi 0, %s19
      %p16 = scmp.ge.s32.totalorder %s15, 4
      %s25 = sphi 0, %s27
      %s28 = sphi 0, %s25
      %s29 = sphi 0, %s28
      %s45 = sphi 0, %s29
      %s51 = sphi 0, %s53
      %s54 = sphi 0, %s51
      %s55 = sphi 0, %s54
      %s71 = sphi 0, %s55
      %s75 = sphi 0, %s75
      %s77 = sphi 0, %s75
      %s78 = sphi 0, %s77
      %s92 = sphi 0, %s78
      %s96 = sphi 0, %s96
      %s98 = sphi 0, %s96
      %s99 = sphi 0, %s98
      %s113 = sphi 0, %s99
      %s117 = sphi 0, %s117
      %s119 = sphi 0, %s117
      %s120 = sphi 0, %s119
      %s134 = sphi 0, %s120
      %s138 = sphi 0, %s138
      %s140 = sphi 0, %s138
      %s141 = sphi 0, %s140
      %s155 = sphi 0, %s141
      %s159 = sphi 0, %s159
      %s161 = sphi 0, %s159
      %s162 = sphi 0, %s161
      %s176 = sphi 0, %s162
      %s180 = sphi 0, %s180
      %s182 = sphi 0, %s180
      %s183 = sphi 0, %s182
      %s197 = sphi 0, %s183
    $region4: #{tpu_custom_call.1} parent=1 // loop_header_branch
      %18 = sbr.rel (%p16) target = $region8
    $region5: #{tpu_custom_call.1} parent=1 // loop_body
      %s20 = ssub.s32 %s15, 1
      %s21 = ssub.s32 %s15, 2
      %s22 = sadd.s32 %s15, 1
      %s23 = ssub.s32 %s15, %s22
      %p24 = scmp.eq.s32.totalorder %s23, 0
      %s26 = sadd.s32 %s25, 1
      %s27 = scalar_select %p24, %s25, %s26
      %p30 = pneg %p24
      %p31 = scmp.eq.s32.totalorder %s15, 1
      %p32 = por %p30, %p31
      %p33 = scmp.ne.s32.totalorder %s25, %s28
      %p34 = scmp.eq.s32.totalorder %s15, 0
      %p35 = por %p33, %p34
      %p36 = scmp.ne.s32.totalorder %s25, %s28
      %p37 = scmp.eq.s32.totalorder %s20, 1
      %p38 = por %p36, %p37
      %p39 = scmp.ne.s32.totalorder %s28, %s29
      %p40 = scmp.eq.s32.totalorder %s20, 0
      %p41 = por %p39, %p40
      %p42 = scmp.ne.s32.totalorder %s28, %s29
      %p43 = scmp.eq.s32.totalorder %s21, 1
      %p44 = por %p42, %p43
      %p46 = scmp.ne.s32.totalorder %s29, %s45
      %p47 = scmp.eq.s32.totalorder %s21, 0
      %p48 = por %p46, %p47
      %s49 = ssub.s32 %s15, %s22
      %p50 = scmp.eq.s32.totalorder %s49, 0
      %s52 = sadd.s32 %s51, 1
      %s53 = scalar_select %p50, %s51, %s52
      %p56 = pneg %p50
      %p57 = scmp.eq.s32.totalorder %s15, 1
      %p58 = por %p56, %p57
      %p59 = scmp.ne.s32.totalorder %s51, %s54
      %p60 = scmp.eq.s32.totalorder %s15, 0
      %p61 = por %p59, %p60
      %p62 = scmp.ne.s32.totalorder %s51, %s54
      %p63 = scmp.eq.s32.totalorder %s20, 1
      %p64 = por %p62, %p63
      %p65 = scmp.ne.s32.totalorder %s54, %s55
      %p66 = scmp.eq.s32.totalorder %s20, 0
      %p67 = por %p65, %p66
      %p68 = scmp.ne.s32.totalorder %s54, %s55
      %p69 = scmp.eq.s32.totalorder %s21, 1
      %p70 = por %p68, %p69
      %p72 = scmp.ne.s32.totalorder %s55, %s71
      %p73 = scmp.eq.s32.totalorder %s21, 0
      %p74 = por %p72, %p73
      %s76 = sadd.s32 %s75, 1
      %p79 = scmp.eq.s32.totalorder %s15, 1
      %p80 = scmp.ne.s32.totalorder %s75, %s77
      %p81 = scmp.eq.s32.totalorder %s15, 0
      %p82 = por %p80, %p81
      %p83 = scmp.ne.s32.totalorder %s75, %s77
      %p84 = scmp.eq.s32.totalorder %s20, 1
      %p85 = por %p83, %p84
      %p86 = scmp.ne.s32.totalorder %s77, %s78
      %p87 = scmp.eq.s32.totalorder %s20, 0
      %p88 = por %p86, %p87
      %p89 = scmp.ne.s32.totalorder %s77, %s78
      %p90 = scmp.eq.s32.totalorder %s21, 1
      %p91 = por %p89, %p90
      %p93 = scmp.ne.s32.totalorder %s78, %s92
      %p94 = scmp.eq.s32.totalorder %s21, 0
      %p95 = por %p93, %p94
      %s97 = sadd.s32 %s96, 1
      %p100 = scmp.eq.s32.totalorder %s15, 1
      %p101 = scmp.ne.s32.totalorder %s96, %s98
      %p102 = scmp.eq.s32.totalorder %s15, 0
      %p103 = por %p101, %p102
      %p104 = scmp.ne.s32.totalorder %s96, %s98
      %p105 = scmp.eq.s32.totalorder %s20, 1
      %p106 = por %p104, %p105
      %p107 = scmp.ne.s32.totalorder %s98, %s99
      %p108 = scmp.eq.s32.totalorder %s20, 0
      %p109 = por %p107, %p108
      %p110 = scmp.ne.s32.totalorder %s98, %s99
      %p111 = scmp.eq.s32.totalorder %s21, 1
      %p112 = por %p110, %p111
      %p114 = scmp.ne.s32.totalorder %s99, %s113
      %p115 = scmp.eq.s32.totalorder %s21, 0
      %p116 = por %p114, %p115
      %s118 = sadd.s32 %s117, 1
      %p121 = scmp.eq.s32.totalorder %s15, 1
      %p122 = scmp.ne.s32.totalorder %s117, %s119
      %p123 = scmp.eq.s32.totalorder %s15, 0
      %p124 = por %p122, %p123
      %p125 = scmp.ne.s32.totalorder %s117, %s119
      %p126 = scmp.eq.s32.totalorder %s20, 1
      %p127 = por %p125, %p126
      %p128 = scmp.ne.s32.totalorder %s119, %s120
      %p129 = scmp.eq.s32.totalorder %s20, 0
      %p130 = por %p128, %p129
      %p131 = scmp.ne.s32.totalorder %s119, %s120
      %p132 = scmp.eq.s32.totalorder %s21, 1
      %p133 = por %p131, %p132
      %p135 = scmp.ne.s32.totalorder %s120, %s134
      %p136 = scmp.eq.s32.totalorder %s21, 0
      %p137 = por %p135, %p136
      %s139 = sadd.s32 %s138, 1
      %p142 = scmp.eq.s32.totalorder %s15, 1
      %p143 = scmp.ne.s32.totalorder %s138, %s140
      %p144 = scmp.eq.s32.totalorder %s15, 0
      %p145 = por %p143, %p144
      %p146 = scmp.ne.s32.totalorder %s138, %s140
      %p147 = scmp.eq.s32.totalorder %s20, 1
      %p148 = por %p146, %p147
      %p149 = scmp.ne.s32.totalorder %s140, %s141
      %p150 = scmp.eq.s32.totalorder %s20, 0
      %p151 = por %p149, %p150
      %p152 = scmp.ne.s32.totalorder %s140, %s141
      %p153 = scmp.eq.s32.totalorder %s21, 1
      %p154 = por %p152, %p153
      %p156 = scmp.ne.s32.totalorder %s141, %s155
      %p157 = scmp.eq.s32.totalorder %s21, 0
      %p158 = por %p156, %p157
      %s160 = sadd.s32 %s159, 1
      %p163 = scmp.eq.s32.totalorder %s15, 1
      %p164 = scmp.ne.s32.totalorder %s159, %s161
      %p165 = scmp.eq.s32.totalorder %s15, 0
      %p166 = por %p164, %p165
      %p167 = scmp.ne.s32.totalorder %s159, %s161
      %p168 = scmp.eq.s32.totalorder %s20, 1
      %p169 = por %p167, %p168
      %p170 = scmp.ne.s32.totalorder %s161, %s162
      %p171 = scmp.eq.s32.totalorder %s20, 0
      %p172 = por %p170, %p171
      %p173 = scmp.ne.s32.totalorder %s161, %s162
      %p174 = scmp.eq.s32.totalorder %s21, 1
      %p175 = por %p173, %p174
      %p177 = scmp.ne.s32.totalorder %s162, %s176
      %p178 = scmp.eq.s32.totalorder %s21, 0
      %p179 = por %p177, %p178
      %s181 = sadd.s32 %s180, 1
      %p184 = scmp.eq.s32.totalorder %s15, 1
      %p185 = scmp.ne.s32.totalorder %s180, %s182
      %p186 = scmp.eq.s32.totalorder %s15, 0
      %p187 = por %p185, %p186
      %p188 = scmp.ne.s32.totalorder %s180, %s182
      %p189 = scmp.eq.s32.totalorder %s20, 1
      %p190 = por %p188, %p189
      %p191 = scmp.ne.s32.totalorder %s182, %s183
      %p192 = scmp.eq.s32.totalorder %s20, 0
      %p193 = por %p191, %p192
      %p194 = scmp.ne.s32.totalorder %s182, %s183
      %p195 = scmp.eq.s32.totalorder %s21, 1
      %p196 = por %p194, %p195
      %p198 = scmp.ne.s32.totalorder %s183, %s197
      %p199 = scmp.eq.s32.totalorder %s21, 0
      %p200 = por %p198, %p199
      %p201 = scmp.le.s32.totalorder 1, %s15
      %p202 = scmp.lt.s32.totalorder %s15, 3
      %p203 = pnand %p201, %p202
      %p204 = pneg %p203
      // Predicated region
      $region9: #{tpu_custom_call.1} parent=5 // pred_check
        _
      $region10: #{tpu_custom_call.1} parent=5 // pred_check_branch
        %206 = sbr.rel (%p203) target = $region12
      $region11: #{tpu_custom_call.1} parent=5 // pred_region
        %s207 = ssub.s32 %s15, 1
        // Predicated region
        $region13: #{tpu_custom_call.1} parent=11 // pred_check
          %p208 = pneg %p88
        $region14: #{tpu_custom_call.1} parent=11 // pred_check_branch
          %210 = sbr.rel (%p208) target = $region16
        $region15: #{tpu_custom_call.1} parent=11 // pred_region
          _
        $region16: #{tpu_custom_call.1} parent=11 // pred_fallthru
          _
        // Predicated region
        $region17: #{tpu_custom_call.1} parent=11 // pred_check
          %p211 = pneg %p109
        $region18: #{tpu_custom_call.1} parent=11 // pred_check_branch
          %213 = sbr.rel (%p211) target = $region20
        $region19: #{tpu_custom_call.1} parent=11 // pred_region
          _
        $region20: #{tpu_custom_call.1} parent=11 // pred_fallthru
          _
        // Predicated region
        $region21: #{tpu_custom_call.1} parent=11 // pred_check
          %p214 = pneg %p130
        $region22: #{tpu_custom_call.1} parent=11 // pred_check_branch
          %216 = sbr.rel (%p214) target = $region24
        $region23: #{tpu_custom_call.1} parent=11 // pred_region
          _
        $region24: #{tpu_custom_call.1} parent=11 // pred_fallthru
          _
        // Predicated region
        $region25: #{tpu_custom_call.1} parent=11 // pred_check
          %p217 = pneg %p151
        $region26: #{tpu_custom_call.1} parent=11 // pred_check_branch
          %219 = sbr.rel (%p217) target = $region28
        $region27: #{tpu_custom_call.1} parent=11 // pred_region
          %s221 = ssub.s32 2048, 2048
          %222 = vsyncadd [#allocation3], %s221
          %s223 = sshll.u32 [#allocation2], 4
          %s224 = int_to_ptr.vmem [resolvable:$true] %s223
          %229 = dma.hbm_to_vmem [thread:$0]  %s5, 2048, %s224, [#allocation3], 128, 128, 8
        $region28: #{tpu_custom_call.1} parent=11 // pred_fallthru
          _
        // Predicated region
        $region29: #{tpu_custom_call.1} parent=11 // pred_check
          %p230 = pneg %p172
        $region30: #{tpu_custom_call.1} parent=11 // pred_check_branch
          %232 = sbr.rel (%p230) target = $region32
        $region31: #{tpu_custom_call.1} parent=11 // pred_region
          _
        $region32: #{tpu_custom_call.1} parent=11 // pred_fallthru
          _
      $region12: #{tpu_custom_call.1} parent=5 // pred_fallthru
        _
      %p233 = scmp.lt.s32.totalorder %s15, 2
      // Predicated region
      $region33: #{tpu_custom_call.1} parent=5 // pred_check
        %p234 = pneg %p233
      $region34: #{tpu_custom_call.1} parent=5 // pred_check_branch
        %236 = sbr.rel (%p234) target = $region36
      $region35: #{tpu_custom_call.1} parent=5 // pred_region
        // Predicated region
        $region37: #{tpu_custom_call.1} parent=35 // pred_check
          %p237 = pneg %p35
        $region38: #{tpu_custom_call.1} parent=35 // pred_check_branch
          %239 = sbr.rel (%p237) target = $region40
        $region39: #{tpu_custom_call.1} parent=35 // pred_region
          %s240 = smul.u32 16, %s15
          %p241 = scmp.lt.s32.totalorder %s240, 31
          %s242 = scalar_select %p241, %s240, 31
          %s243 = smul.addr %s242, 8
          %s244 = scalar_lea.vmem %s0, %s243
          %s245 = smul.u32 16, %s15
        $region40: #{tpu_custom_call.1} parent=35 // pred_fallthru
          _
        // Predicated region
        $region41: #{tpu_custom_call.1} parent=35 // pred_check
          %p246 = pneg %p61
        $region42: #{tpu_custom_call.1} parent=35 // pred_check_branch
          %248 = sbr.rel (%p246) target = $region44
        $region43: #{tpu_custom_call.1} parent=35 // pred_region
          %p249 = scmp.lt.s32.totalorder %s15, 1
          %s250 = scalar_select %p249, %s15, 1
          %s251 = scalar_lea.vmem %s1, %s250
        $region44: #{tpu_custom_call.1} parent=35 // pred_fallthru
          _
      $region36: #{tpu_custom_call.1} parent=5 // pred_fallthru
        _
      %p252 = scmp.le.s32.totalorder 1, %s15
      %p253 = scmp.lt.s32.totalorder %s15, 3
      %p254 = pnand %p252, %p253
      %p255 = pneg %p254
      // Predicated region
      $region45: #{tpu_custom_call.1} parent=5 // pred_check
        _
      $region46: #{tpu_custom_call.1} parent=5 // pred_check_branch
        %257 = sbr.rel (%p254) target = $region48
      $region47: #{tpu_custom_call.1} parent=5 // pred_region
        %s258 = ssub.s32 %s15, 1
        // Predicated region
        $region49: #{tpu_custom_call.1} parent=47 // pred_check
          %p259 = pneg %p151
        $region50: #{tpu_custom_call.1} parent=47 // pred_check_branch
          %261 = sbr.rel (%p259) target = $region52
        $region51: #{tpu_custom_call.1} parent=47 // pred_region
          %262 = dma.done [#allocation3], 2048
        $region52: #{tpu_custom_call.1} parent=47 // pred_fallthru
          _
        %s263 = smul.u32 16, %s20
        %p264 = scmp.lt.s32.totalorder %s263, 31
        %s265 = scalar_select %p264, %s263, 31
        %s266 = smul.addr %s265, 8
        %s267 = scalar_lea.vmem %s0, %s266
        %p268 = pneg %p41
        %p269 = pneg %p38
        %p270 = scmp.lt.s32.totalorder %s20, 1
        %s271 = scalar_select %p270, %s20, 1
        %s272 = scalar_lea.vmem %s1, %s271
        %p273 = pneg %p67
        %p274 = pneg %p64
        %p275 = pneg %p88
        %p276 = pneg %p85
        %p277 = pneg %p109
        %p278 = pneg %p106
        %p279 = pneg %p130
        %p280 = pneg %p127
        %p281 = pneg %p151
        %p282 = pneg %p148
        %p283 = pneg %p172
        %p284 = pneg %p169
        %p285 = pneg %p193
        %p286 = pneg %p190
        %s287 = smul.u32 16, %s20
        %p288 = scmp.lt.s32.totalorder %s287, 31
        %s289 = scalar_select %p288, %s287, 31
        %s290 = smul.addr %s289, 8
        %s291 = scalar_lea.vmem %s0, %s290
        %s292 = smul.u32 16, %s20
        %p293 = scmp.lt.s32.totalorder %s20, 1
        %s294 = scalar_select %p293, %s20, 1
        %s295 = scalar_lea.vmem %s1, %s294
        %p296 = scmp.eq.s32.totalorder %s20, 0
        // Predicated region
        $region53: #{tpu_custom_call.1} parent=47 // pred_check
          %p297 = pneg %p296
        $region54: #{tpu_custom_call.1} parent=47 // pred_check_branch
          %299 = sbr.rel (%p297) target = $region56
        $region55: #{tpu_custom_call.1} parent=47 // pred_region
          %300 = vst [vmem:[#allocation5] sm:$0xff] 0.0
        $region56: #{tpu_custom_call.1} parent=47 // pred_fallthru
          _
        %v301 = vld [vmem:[%s291] sm:$0xff]
        %v302 = vld [vmem:[%s291 + $0x8] sm:$0xff]
        %v303 = vld [vmem:[%s291 + $0x10] sm:$0xff]
        %v304 = vld [vmem:[%s291 + $0x18] sm:$0xff]
        %v305 = vld [vmem:[%s291 + $0x20] sm:$0xff]
        %v306 = vld [vmem:[%s291 + $0x28] sm:$0xff]
        %v307 = vld [vmem:[%s291 + $0x30] sm:$0xff]
        %v308 = vld [vmem:[%s291 + $0x38] sm:$0xff]
        %v309 = vld [vmem:[%s291 + $0x40] sm:$0xff]
        %v310 = vld [vmem:[%s291 + $0x48] sm:$0xff]
        %v311 = vld [vmem:[%s291 + $0x50] sm:$0xff]
        %v312 = vld [vmem:[%s291 + $0x58] sm:$0xff]
        %v313 = vld [vmem:[%s291 + $0x60] sm:$0xff]
        %v314 = vld [vmem:[%s291 + $0x68] sm:$0xff]
        %v315 = vld [vmem:[%s291 + $0x70] sm:$0xff]
        %v316 = vld [vmem:[%s291 + $0x78] sm:$0xff]
        %v317 = vlaneseq
        %v318 = vand.u32 %v317, 127
        %319 = vset.pattern.permute.xlu0 0
        %320 = vperm.xlu0 %319, %v301
        %v321 = vpop.permute.xlu0 %320
        %322 = vset.pattern.permute.xlu0 0
        %323 = vperm.xlu0 %322, %v302
        %v324 = vpop.permute.xlu0 %323
        %325 = vset.pattern.permute.xlu0 0
        %326 = vperm.xlu0 %325, %v303
        %v327 = vpop.permute.xlu0 %326
        %328 = vset.pattern.permute.xlu0 0
        %329 = vperm.xlu0 %328, %v304
        %v330 = vpop.permute.xlu0 %329
        %331 = vset.pattern.permute.xlu0 0
        %332 = vperm.xlu0 %331, %v305
        %v333 = vpop.permute.xlu0 %332
        %334 = vset.pattern.permute.xlu0 0
        %335 = vperm.xlu0 %334, %v306
        %v336 = vpop.permute.xlu0 %335
        %337 = vset.pattern.permute.xlu0 0
        %338 = vperm.xlu0 %337, %v307
        %v339 = vpop.permute.xlu0 %338
        %340 = vset.pattern.permute.xlu0 0
        %341 = vperm.xlu0 %340, %v308
        %v342 = vpop.permute.xlu0 %341
        %343 = vset.pattern.permute.xlu0 0
        %344 = vperm.xlu0 %343, %v309
        %v345 = vpop.permute.xlu0 %344
        %346 = vset.pattern.permute.xlu0 0
        %347 = vperm.xlu0 %346, %v310
        %v348 = vpop.permute.xlu0 %347
        %349 = vset.pattern.permute.xlu0 0
        %350 = vperm.xlu0 %349, %v311
        %v351 = vpop.permute.xlu0 %350
        %352 = vset.pattern.permute.xlu0 0
        %353 = vperm.xlu0 %352, %v312
        %v354 = vpop.permute.xlu0 %353
        %355 = vset.pattern.permute.xlu0 0
        %356 = vperm.xlu0 %355, %v313
        %v357 = vpop.permute.xlu0 %356
        %358 = vset.pattern.permute.xlu0 0
        %359 = vperm.xlu0 %358, %v314
        %v360 = vpop.permute.xlu0 %359
        %361 = vset.pattern.permute.xlu0 0
        %362 = vperm.xlu0 %361, %v315
        %v363 = vpop.permute.xlu0 %362
        %364 = vset.pattern.permute.xlu0 0
        %365 = vperm.xlu0 %364, %v316
        %v366 = vpop.permute.xlu0 %365
        %vm367 = vcmp.eq.s32.totalorder %v321, %v318
        %vm368 = vcmp.eq.s32.totalorder %v324, %v318
        %vm369 = vcmp.eq.s32.totalorder %v327, %v318
        %vm370 = vcmp.eq.s32.totalorder %v330, %v318
        %vm371 = vcmp.eq.s32.totalorder %v333, %v318
        %vm372 = vcmp.eq.s32.totalorder %v336, %v318
        %vm373 = vcmp.eq.s32.totalorder %v339, %v318
        %vm374 = vcmp.eq.s32.totalorder %v342, %v318
        %vm375 = vcmp.eq.s32.totalorder %v345, %v318
        %vm376 = vcmp.eq.s32.totalorder %v348, %v318
        %vm377 = vcmp.eq.s32.totalorder %v351, %v318
        %vm378 = vcmp.eq.s32.totalorder %v354, %v318
        %vm379 = vcmp.eq.s32.totalorder %v357, %v318
        %vm380 = vcmp.eq.s32.totalorder %v360, %v318
        %vm381 = vcmp.eq.s32.totalorder %v363, %v318
        %vm382 = vcmp.eq.s32.totalorder %v366, %v318
        %v383 = vsel %vm367, 1, 0
        %v384 = vsel %vm368, 1, 0
        %v385 = vsel %vm369, 1, 0
        %v386 = vsel %vm370, 1, 0
        %v387 = vsel %vm371, 1, 0
        %v388 = vsel %vm372, 1, 0
        %v389 = vsel %vm373, 1, 0
        %v390 = vsel %vm374, 1, 0
        %v391 = vsel %vm375, 1, 0
        %v392 = vsel %vm376, 1, 0
        %v393 = vsel %vm377, 1, 0
        %v394 = vsel %vm378, 1, 0
        %v395 = vsel %vm379, 1, 0
        %v396 = vsel %vm380, 1, 0
        %v397 = vsel %vm381, 1, 0
        %v398 = vsel %vm382, 1, 0
        %v399 = vcvt.s32.f32 %v383
        %v400 = vcvt.s32.f32 %v384
        %v401 = vcvt.s32.f32 %v385
        %v402 = vcvt.s32.f32 %v386
        %v403 = vcvt.s32.f32 %v387
        %v404 = vcvt.s32.f32 %v388
        %v405 = vcvt.s32.f32 %v389
        %v406 = vcvt.s32.f32 %v390
        %v407 = vcvt.s32.f32 %v391
        %v408 = vcvt.s32.f32 %v392
        %v409 = vcvt.s32.f32 %v393
        %v410 = vcvt.s32.f32 %v394
        %v411 = vcvt.s32.f32 %v395
        %v412 = vcvt.s32.f32 %v396
        %v413 = vcvt.s32.f32 %v397
        %v414 = vcvt.s32.f32 %v398
        %v415 = vld [vmem:[%s295] sm:$0x1]
        %v416 = vlaneseq
        %v417 = vshrl.u32 %v416, 7
        %v418 = vlaneseq
        %v419 = vshrl.u32 %v418, 7
        %v420 = vsub.s32 0, %v419
        %v421 = vrot.slane %v415, %v420
        %vm422 = vcmp.eq.s32.totalorder %v421, %v417
        %v423 = vsel %vm422, 1, 0
        %v424 = vcvt.s32.f32 %v423
        %v425 = vld [vmem:[%s2] sm:$0xff]
        %v426 = vld [vmem:[%s2 + $0x8] sm:$0xff]
        %v427 = vld [vmem:[%s2 + $0x10] sm:$0xff]
        %v428 = vld [vmem:[%s2 + $0x18] sm:$0xff]
        %v429 = vld [vmem:[%s2 + $0x20] sm:$0xff]
        %v430 = vld [vmem:[%s2 + $0x28] sm:$0xff]
        %v431 = vld [vmem:[%s2 + $0x30] sm:$0xff]
        %v432 = vld [vmem:[%s2 + $0x38] sm:$0xff]
        %v433 = vld [vmem:[%s2 + $0x40] sm:$0xff]
        %v434 = vld [vmem:[%s2 + $0x48] sm:$0xff]
        %v435 = vld [vmem:[%s2 + $0x50] sm:$0xff]
        %v436 = vld [vmem:[%s2 + $0x58] sm:$0xff]
        %v437 = vld [vmem:[%s2 + $0x60] sm:$0xff]
        %v438 = vld [vmem:[%s2 + $0x68] sm:$0xff]
        %v439 = vld [vmem:[%s2 + $0x70] sm:$0xff]
        %v440 = vld [vmem:[%s2 + $0x78] sm:$0xff]
        %441 = vmatprep.subr.mxu0 0.0
        %442 = vmatpush1.msra.mxu0 %v425
        %443 = vmatprep.subr.mxu0 0.0
        %444 = vmatpush1.msra.mxu0 %v426
        %445 = vmatprep.subr.mxu0 0.0
        %446 = vmatpush1.msra.mxu0 %v427
        %447 = vmatprep.subr.mxu0 0.0
        %448 = vmatpush1.msra.mxu0 %v428
        %449 = vmatprep.subr.mxu0 0.0
        %450 = vmatpush1.msra.mxu0 %v429
        %451 = vmatprep.subr.mxu0 0.0
        %452 = vmatpush1.msra.mxu0 %v430
        %453 = vmatprep.subr.mxu0 0.0
        %454 = vmatpush1.msra.mxu0 %v431
        %455 = vmatprep.subr.mxu0 0.0
        %456 = vmatpush1.msra.mxu0 %v432
        %457 = vmatprep.subr.mxu0 0.0
        %458 = vmatpush1.msra.mxu0 %v433
        %459 = vmatprep.subr.mxu0 0.0
        %460 = vmatpush1.msra.mxu0 %v434
        %461 = vmatprep.subr.mxu0 0.0
        %462 = vmatpush1.msra.mxu0 %v435
        %463 = vmatprep.subr.mxu0 0.0
        %464 = vmatpush1.msra.mxu0 %v436
        %465 = vmatprep.subr.mxu0 0.0
        %466 = vmatpush1.msra.mxu0 %v437
        %467 = vmatprep.subr.mxu0 0.0
        %468 = vmatpush1.msra.mxu0 %v438
        %469 = vmatprep.subr.mxu0 0.0
        %470 = vmatpush1.msra.mxu0 %v439
        %471 = vmatprep.subr.mxu0 0.0
        %472 = vmatpush1.msra.mxu0 %v440
        %473 = vmatprep.subr.mxu0 0.0
        %474 = vmatpush1.msra.mxu0 0.0
        %475 = vmatprep.subr.mxu0 0.0
        %476 = vmatpush1.msra.mxu0 0.0
        %477 = vmatprep.subr.mxu0 0.0
        %478 = vmatpush1.msra.mxu0 0.0
        %479 = vmatprep.subr.mxu0 0.0
        %480 = vmatpush1.msra.mxu0 0.0
        %481 = vmatprep.subr.mxu0 0.0
        %482 = vmatpush1.msra.mxu0 0.0
        %483 = vmatprep.subr.mxu0 0.0
        %484 = vmatpush1.msra.mxu0 0.0
        %485 = vmatprep.subr.mxu0 0.0
        %486 = vmatpush1.msra.mxu0 0.0
        %487 = vmatprep.subr.mxu0 0.0
        %488 = vmatpush1.msra.mxu0 0.0
        %489 = vmatprep.subr.mxu0 0.0
        %490 = vmatpush1.msra.mxu0 0.0
        %491 = vmatprep.subr.mxu0 0.0
        %492 = vmatpush1.msra.mxu0 0.0
        %493 = vmatprep.subr.mxu0 0.0
        %494 = vmatpush1.msra.mxu0 0.0
        %495 = vmatprep.subr.mxu0 0.0
        %496 = vmatpush1.msra.mxu0 0.0
        %497 = vmatprep.subr.mxu0 0.0
        %498 = vmatpush1.msra.mxu0 0.0
        %499 = vmatprep.subr.mxu0 0.0
        %500 = vmatpush1.msra.mxu0 0.0
        %501 = vmatprep.subr.mxu0 0.0
        %502 = vmatpush1.msra.mxu0 0.0
        %503 = vmatprep.subr.mxu0 0.0
        %504 = vmatpush1.msra.mxu0 0.0
        %505 = vmatprep.mubr.f32.mxu0 0.0
        %506 = vmatmul.mubr.f32.gmra.mrb[0].mxu0 %v399
        %v507 = vpop.f32.mrb[0].mxu0
        %v508 = vadd.f32 0.0, %v507
        %v509 = vpop.f32.mrb[0].mxu0
        %510 = vmatprep.mubr.f32.mxu0 0.0
        %511 = vmatmul.mubr.f32.gmra.mrb[0].mxu0 %v400
        %v512 = vpop.f32.mrb[0].mxu0
        %v513 = vadd.f32 0.0, %v512
        %v514 = vpop.f32.mrb[0].mxu0
        %515 = vmatprep.mubr.f32.mxu0 0.0
        %516 = vmatmul.mubr.f32.gmra.mrb[0].mxu0 %v401
        %v517 = vpop.f32.mrb[0].mxu0
        %v518 = vadd.f32 0.0, %v517
        %v519 = vpop.f32.mrb[0].mxu0
        %520 = vmatprep.mubr.f32.mxu0 0.0
        %521 = vmatmul.mubr.f32.gmra.mrb[0].mxu0 %v402
        %v522 = vpop.f32.mrb[0].mxu0
        %v523 = vadd.f32 0.0, %v522
        %v524 = vpop.f32.mrb[0].mxu0
        %525 = vmatprep.mubr.f32.mxu0 0.0
        %526 = vmatmul.mubr.f32.gmra.mrb[0].mxu0 %v403
        %v527 = vpop.f32.mrb[0].mxu0
        %v528 = vadd.f32 0.0, %v527
        %v529 = vpop.f32.mrb[0].mxu0
        %530 = vmatprep.mubr.f32.mxu0 0.0
        %531 = vmatmul.mubr.f32.gmra.mrb[0].mxu0 %v404
        %v532 = vpop.f32.mrb[0].mxu0
        %v533 = vadd.f32 0.0, %v532
        %v534 = vpop.f32.mrb[0].mxu0
        %535 = vmatprep.mubr.f32.mxu0 0.0
        %536 = vmatmul.mubr.f32.gmra.mrb[0].mxu0 %v405
        %v537 = vpop.f32.mrb[0].mxu0
        %v538 = vadd.f32 0.0, %v537
        %v539 = vpop.f32.mrb[0].mxu0
        %540 = vmatprep.mubr.f32.mxu0 0.0
        %541 = vmatmul.mubr.f32.gmra.mrb[0].mxu0 %v406
        %v542 = vpop.f32.mrb[0].mxu0
        %v543 = vadd.f32 0.0, %v542
        %v544 = vpop.f32.mrb[0].mxu0
        %545 = vmatprep.mubr.f32.mxu0 0.0
        %546 = vmatmul.mubr.f32.gmra.mrb[0].mxu0 %v407
        %v547 = vpop.f32.mrb[0].mxu0
        %v548 = vadd.f32 0.0, %v547
        %v549 = vpop.f32.mrb[0].mxu0
        %550 = vmatprep.mubr.f32.mxu0 0.0
        %551 = vmatmul.mubr.f32.gmra.mrb[0].mxu0 %v408
        %v552 = vpop.f32.mrb[0].mxu0
        %v553 = vadd.f32 0.0, %v552
        %v554 = vpop.f32.mrb[0].mxu0
        %555 = vmatprep.mubr.f32.mxu0 0.0
        %556 = vmatmul.mubr.f32.gmra.mrb[0].mxu0 %v409
        %v557 = vpop.f32.mrb[0].mxu0
        %v558 = vadd.f32 0.0, %v557
        %v559 = vpop.f32.mrb[0].mxu0
        %560 = vmatprep.mubr.f32.mxu0 0.0
        %561 = vmatmul.mubr.f32.gmra.mrb[0].mxu0 %v410
        %v562 = vpop.f32.mrb[0].mxu0
        %v563 = vadd.f32 0.0, %v562
        %v564 = vpop.f32.mrb[0].mxu0
        %565 = vmatprep.mubr.f32.mxu0 0.0
        %566 = vmatmul.mubr.f32.gmra.mrb[0].mxu0 %v411
        %v567 = vpop.f32.mrb[0].mxu0
        %v568 = vadd.f32 0.0, %v567
        %v569 = vpop.f32.mrb[0].mxu0
        %570 = vmatprep.mubr.f32.mxu0 0.0
        %571 = vmatmul.mubr.f32.gmra.mrb[0].mxu0 %v412
        %v572 = vpop.f32.mrb[0].mxu0
        %v573 = vadd.f32 0.0, %v572
        %v574 = vpop.f32.mrb[0].mxu0
        %575 = vmatprep.mubr.f32.mxu0 0.0
        %576 = vmatmul.mubr.f32.gmra.mrb[0].mxu0 %v413
        %v577 = vpop.f32.mrb[0].mxu0
        %v578 = vadd.f32 0.0, %v577
        %v579 = vpop.f32.mrb[0].mxu0
        %580 = vmatprep.mubr.f32.mxu0 0.0
        %581 = vmatmul.mubr.f32.gmra.mrb[0].mxu0 %v414
        %v582 = vpop.f32.mrb[0].mxu0
        %v583 = vadd.f32 0.0, %v582
        %v584 = vpop.f32.mrb[0].mxu0
        %585 = vdwg.mxu0
        %v586 = vld [vmem:[#allocation5] sm:$0xff]
        %587 = vmatprep.subr.mxu0 0.0
        %588 = vmatpush1.msra.mxu0 %v508
        %589 = vmatprep.subr.mxu0 0.0
        %590 = vmatpush1.msra.mxu0 %v513
        %591 = vmatprep.subr.mxu0 0.0
        %592 = vmatpush1.msra.mxu0 %v518
        %593 = vmatprep.subr.mxu0 0.0
        %594 = vmatpush1.msra.mxu0 %v523
        %595 = vmatprep.subr.mxu0 0.0
        %596 = vmatpush1.msra.mxu0 %v528
        %597 = vmatprep.subr.mxu0 0.0
        %598 = vmatpush1.msra.mxu0 %v533
        %599 = vmatprep.subr.mxu0 0.0
        %600 = vmatpush1.msra.mxu0 %v538
        %601 = vmatprep.subr.mxu0 0.0
        %602 = vmatpush1.msra.mxu0 %v543
        %603 = vmatprep.subr.mxu0 0.0
        %604 = vmatpush1.msra.mxu0 %v548
        %605 = vmatprep.subr.mxu0 0.0
        %606 = vmatpush1.msra.mxu0 %v553
        %607 = vmatprep.subr.mxu0 0.0
        %608 = vmatpush1.msra.mxu0 %v558
        %609 = vmatprep.subr.mxu0 0.0
        %610 = vmatpush1.msra.mxu0 %v563
        %611 = vmatprep.subr.mxu0 0.0
        %612 = vmatpush1.msra.mxu0 %v568
        %613 = vmatprep.subr.mxu0 0.0
        %614 = vmatpush1.msra.mxu0 %v573
        %615 = vmatprep.subr.mxu0 0.0
        %616 = vmatpush1.msra.mxu0 %v578
        %617 = vmatprep.subr.mxu0 0.0
        %618 = vmatpush1.msra.mxu0 %v583
        %619 = vmatprep.subr.mxu0 0.0
        %620 = vmatpush1.msra.mxu0 0.0
        %621 = vmatprep.subr.mxu0 0.0
        %622 = vmatpush1.msra.mxu0 0.0
        %623 = vmatprep.subr.mxu0 0.0
        %624 = vmatpush1.msra.mxu0 0.0
        %625 = vmatprep.subr.mxu0 0.0
        %626 = vmatpush1.msra.mxu0 0.0
        %627 = vmatprep.subr.mxu0 0.0
        %628 = vmatpush1.msra.mxu0 0.0
        %629 = vmatprep.subr.mxu0 0.0
        %630 = vmatpush1.msra.mxu0 0.0
        %631 = vmatprep.subr.mxu0 0.0
        %632 = vmatpush1.msra.mxu0 0.0
        %633 = vmatprep.subr.mxu0 0.0
        %634 = vmatpush1.msra.mxu0 0.0
        %635 = vmatprep.subr.mxu0 0.0
        %636 = vmatpush1.msra.mxu0 0.0
        %637 = vmatprep.subr.mxu0 0.0
        %638 = vmatpush1.msra.mxu0 0.0
        %639 = vmatprep.subr.mxu0 0.0
        %640 = vmatpush1.msra.mxu0 0.0
        %641 = vmatprep.subr.mxu0 0.0
        %642 = vmatpush1.msra.mxu0 0.0
        %643 = vmatprep.subr.mxu0 0.0
        %644 = vmatpush1.msra.mxu0 0.0
        %645 = vmatprep.subr.mxu0 0.0
        %646 = vmatpush1.msra.mxu0 0.0
        %647 = vmatprep.subr.mxu0 0.0
        %648 = vmatpush1.msra.mxu0 0.0
        %649 = vmatprep.subr.mxu0 0.0
        %650 = vmatpush1.msra.mxu0 0.0
        %651 = vmatprep.mubr.f32.mxu0 0.0
        %652 = vmatmul.mubr.f32.gmra.mrb[0].mxu0 %v424
        %v653 = vpop.f32.mrb[0].mxu0
        %v654 = vadd.f32 0.0, %v653
        %v655 = vpop.f32.mrb[0].mxu0
        %656 = vdwg.mxu0
        %v657 = vadd.f32 %v586, %v654
        %658 = vst [vmem:[#allocation5] sm:$0xff] %v657
        %p659 = scmp.eq.s32.totalorder %s20, 1
        // Predicated region
        $region57: #{tpu_custom_call.1} parent=47 // pred_check
          %p660 = pneg %p659
        $region58: #{tpu_custom_call.1} parent=47 // pred_check_branch
          %662 = sbr.rel (%p660) target = $region60
        $region59: #{tpu_custom_call.1} parent=47 // pred_region
          %v663 = vld [vmem:[#allocation5] sm:$0xff]
          %v664 = vld [vmem:[%s3] sm:$0xff]
          %v665 = vld [vmem:[%s3 + $0x8] sm:$0xff]
          %v666 = vld [vmem:[%s3 + $0x10] sm:$0xff]
          %v667 = vld [vmem:[%s3 + $0x18] sm:$0xff]
          %v668 = vld [vmem:[%s3 + $0x20] sm:$0xff]
          %v669 = vld [vmem:[%s3 + $0x28] sm:$0xff]
          %v670 = vld [vmem:[%s3 + $0x30] sm:$0xff]
          %v671 = vld [vmem:[%s3 + $0x38] sm:$0xff]
          %v672 = vld [vmem:[%s3 + $0x40] sm:$0xff]
          %v673 = vld [vmem:[%s3 + $0x48] sm:$0xff]
          %v674 = vld [vmem:[%s3 + $0x50] sm:$0xff]
          %v675 = vld [vmem:[%s3 + $0x58] sm:$0xff]
          %v676 = vld [vmem:[%s3 + $0x60] sm:$0xff]
          %v677 = vld [vmem:[%s3 + $0x68] sm:$0xff]
          %v678 = vld [vmem:[%s3 + $0x70] sm:$0xff]
          %v679 = vld [vmem:[%s3 + $0x78] sm:$0xff]
          %v680 = vld [vmem:[%s4] sm:$0x1]
          %v682 = vlaneseq
          %v683 = vshrl.u32 %v682, 7
          %v684 = vsub.s32 0, %v683
          %v685 = vrot.slane %v680, %v684
          %687 = vmatprep.subr.mxu0 0.0
          %688 = vmatpush1.msra.mxu0 %v664
          %689 = vmatprep.subr.mxu0 0.0
          %690 = vmatpush1.msra.mxu0 %v665
          %691 = vmatprep.subr.mxu0 0.0
          %692 = vmatpush1.msra.mxu0 %v666
          %693 = vmatprep.subr.mxu0 0.0
          %694 = vmatpush1.msra.mxu0 %v667
          %695 = vmatprep.subr.mxu0 0.0
          %696 = vmatpush1.msra.mxu0 %v668
          %697 = vmatprep.subr.mxu0 0.0
          %698 = vmatpush1.msra.mxu0 %v669
          %699 = vmatprep.subr.mxu0 0.0
          %700 = vmatpush1.msra.mxu0 %v670
          %701 = vmatprep.subr.mxu0 0.0
          %702 = vmatpush1.msra.mxu0 %v671
          %703 = vmatprep.subr.mxu0 0.0
          %704 = vmatpush1.msra.mxu0 %v672
          %705 = vmatprep.subr.mxu0 0.0
          %706 = vmatpush1.msra.mxu0 %v673
          %707 = vmatprep.subr.mxu0 0.0
          %708 = vmatpush1.msra.mxu0 %v674
          %709 = vmatprep.subr.mxu0 0.0
          %710 = vmatpush1.msra.mxu0 %v675
          %711 = vmatprep.subr.mxu0 0.0
          %712 = vmatpush1.msra.mxu0 %v676
          %713 = vmatprep.subr.mxu0 0.0
          %714 = vmatpush1.msra.mxu0 %v677
          %715 = vmatprep.subr.mxu0 0.0
          %716 = vmatpush1.msra.mxu0 %v678
          %717 = vmatprep.subr.mxu0 0.0
          %718 = vmatpush1.msra.mxu0 %v679
          %719 = vmatprep.subr.mxu0 0.0
          %720 = vmatpush1.msra.mxu0 0.0
          %721 = vmatprep.subr.mxu0 0.0
          %722 = vmatpush1.msra.mxu0 0.0
          %723 = vmatprep.subr.mxu0 0.0
          %724 = vmatpush1.msra.mxu0 0.0
          %725 = vmatprep.subr.mxu0 0.0
          %726 = vmatpush1.msra.mxu0 0.0
          %727 = vmatprep.subr.mxu0 0.0
          %728 = vmatpush1.msra.mxu0 0.0
          %729 = vmatprep.subr.mxu0 0.0
          %730 = vmatpush1.msra.mxu0 0.0
          %731 = vmatprep.subr.mxu0 0.0
          %732 = vmatpush1.msra.mxu0 0.0
          %733 = vmatprep.subr.mxu0 0.0
          %734 = vmatpush1.msra.mxu0 0.0
          %735 = vmatprep.subr.mxu0 0.0
          %736 = vmatpush1.msra.mxu0 0.0
          %737 = vmatprep.subr.mxu0 0.0
          %738 = vmatpush1.msra.mxu0 0.0
          %739 = vmatprep.subr.mxu0 0.0
          %740 = vmatpush1.msra.mxu0 0.0
          %741 = vmatprep.subr.mxu0 0.0
          %742 = vmatpush1.msra.mxu0 0.0
          %743 = vmatprep.subr.mxu0 0.0
          %744 = vmatpush1.msra.mxu0 0.0
          %745 = vmatprep.subr.mxu0 0.0
          %746 = vmatpush1.msra.mxu0 0.0
          %747 = vmatprep.subr.mxu0 0.0
          %748 = vmatpush1.msra.mxu0 0.0
          %749 = vmatprep.subr.mxu0 0.0
          %750 = vmatpush1.msra.mxu0 0.0
          %751 = vmatprep.mubr.f32.mxu0 0.0
          %752 = vmatmul.mubr.f32.gmra.mrb[0].mxu0 %v663
          %v753 = vpop.f32.mrb[0].mxu0
          %v754 = vadd.f32 %v685, %v753
          %v755 = vpop.f32.mrb[0].mxu0
          %756 = vdwg.mxu0
          %v757 = vmax.f32 %v754, 0.0
          %v758 = vld [vmem:[#allocation2] sm:$0xff]
          %v759 = vld [vmem:[#allocation2 + $0x8] sm:$0xff]
          %v760 = vld [vmem:[#allocation2 + $0x10] sm:$0xff]
          %v761 = vld [vmem:[#allocation2 + $0x18] sm:$0xff]
          %v762 = vld [vmem:[#allocation2 + $0x20] sm:$0xff]
          %v763 = vld [vmem:[#allocation2 + $0x28] sm:$0xff]
          %v764 = vld [vmem:[#allocation2 + $0x30] sm:$0xff]
          %v765 = vld [vmem:[#allocation2 + $0x38] sm:$0xff]
          %v766 = vld [vmem:[#allocation2 + $0x40] sm:$0xff]
          %v767 = vld [vmem:[#allocation2 + $0x48] sm:$0xff]
          %v768 = vld [vmem:[#allocation2 + $0x50] sm:$0xff]
          %v769 = vld [vmem:[#allocation2 + $0x58] sm:$0xff]
          %v770 = vld [vmem:[#allocation2 + $0x60] sm:$0xff]
          %v771 = vld [vmem:[#allocation2 + $0x68] sm:$0xff]
          %v772 = vld [vmem:[#allocation2 + $0x70] sm:$0xff]
          %v773 = vld [vmem:[#allocation2 + $0x78] sm:$0xff]
          %v774 = vld [vmem:[%s6] sm:$0x1]
          %v776 = vlaneseq
          %v777 = vshrl.u32 %v776, 7
          %v778 = vsub.s32 0, %v777
          %v779 = vrot.slane %v774, %v778
          %781 = vmatprep.subr.mxu0 0.0
          %782 = vmatpush1.msra.mxu0 %v758
          %783 = vmatprep.subr.mxu0 0.0
          %784 = vmatpush1.msra.mxu0 %v759
          %785 = vmatprep.subr.mxu0 0.0
          %786 = vmatpush1.msra.mxu0 %v760
          %787 = vmatprep.subr.mxu0 0.0
          %788 = vmatpush1.msra.mxu0 %v761
          %789 = vmatprep.subr.mxu0 0.0
          %790 = vmatpush1.msra.mxu0 %v762
          %791 = vmatprep.subr.mxu0 0.0
          %792 = vmatpush1.msra.mxu0 %v763
          %793 = vmatprep.subr.mxu0 0.0
          %794 = vmatpush1.msra.mxu0 %v764
          %795 = vmatprep.subr.mxu0 0.0
          %796 = vmatpush1.msra.mxu0 %v765
          %797 = vmatprep.subr.mxu0 0.0
          %798 = vmatpush1.msra.mxu0 %v766
          %799 = vmatprep.subr.mxu0 0.0
          %800 = vmatpush1.msra.mxu0 %v767
          %801 = vmatprep.subr.mxu0 0.0
          %802 = vmatpush1.msra.mxu0 %v768
          %803 = vmatprep.subr.mxu0 0.0
          %804 = vmatpush1.msra.mxu0 %v769
          %805 = vmatprep.subr.mxu0 0.0
          %806 = vmatpush1.msra.mxu0 %v770
          %807 = vmatprep.subr.mxu0 0.0
          %808 = vmatpush1.msra.mxu0 %v771
          %809 = vmatprep.subr.mxu0 0.0
          %810 = vmatpush1.msra.mxu0 %v772
          %811 = vmatprep.subr.mxu0 0.0
          %812 = vmatpush1.msra.mxu0 %v773
          %813 = vmatprep.subr.mxu0 0.0
          %814 = vmatpush1.msra.mxu0 0.0
          %815 = vmatprep.subr.mxu0 0.0
          %816 = vmatpush1.msra.mxu0 0.0
          %817 = vmatprep.subr.mxu0 0.0
          %818 = vmatpush1.msra.mxu0 0.0
          %819 = vmatprep.subr.mxu0 0.0
          %820 = vmatpush1.msra.mxu0 0.0
          %821 = vmatprep.subr.mxu0 0.0
          %822 = vmatpush1.msra.mxu0 0.0
          %823 = vmatprep.subr.mxu0 0.0
          %824 = vmatpush1.msra.mxu0 0.0
          %825 = vmatprep.subr.mxu0 0.0
          %826 = vmatpush1.msra.mxu0 0.0
          %827 = vmatprep.subr.mxu0 0.0
          %828 = vmatpush1.msra.mxu0 0.0
          %829 = vmatprep.subr.mxu0 0.0
          %830 = vmatpush1.msra.mxu0 0.0
          %831 = vmatprep.subr.mxu0 0.0
          %832 = vmatpush1.msra.mxu0 0.0
          %833 = vmatprep.subr.mxu0 0.0
          %834 = vmatpush1.msra.mxu0 0.0
          %835 = vmatprep.subr.mxu0 0.0
          %836 = vmatpush1.msra.mxu0 0.0
          %837 = vmatprep.subr.mxu0 0.0
          %838 = vmatpush1.msra.mxu0 0.0
          %839 = vmatprep.subr.mxu0 0.0
          %840 = vmatpush1.msra.mxu0 0.0
          %841 = vmatprep.subr.mxu0 0.0
          %842 = vmatpush1.msra.mxu0 0.0
          %843 = vmatprep.subr.mxu0 0.0
          %844 = vmatpush1.msra.mxu0 0.0
          %845 = vmatprep.mubr.f32.mxu0 0.0
          %846 = vmatmul.mubr.f32.gmra.mrb[0].mxu0 %v757
          %v847 = vpop.f32.mrb[0].mxu0
          %v848 = vadd.f32 %v779, %v847
          %v849 = vpop.f32.mrb[0].mxu0
          %850 = vdwg.mxu0
          %851 = vst [vmem:[#allocation5] sm:$0xff] %v848
        $region60: #{tpu_custom_call.1} parent=47 // pred_fallthru
          _
        // Predicated region
        $region61: #{tpu_custom_call.1} parent=47 // pred_check
          %p852 = pneg %p190
        $region62: #{tpu_custom_call.1} parent=47 // pred_check_branch
          %854 = sbr.rel (%p852) target = $region64
        $region63: #{tpu_custom_call.1} parent=47 // pred_region
          %s856 = ssub.s32 128, 128
          %857 = vsyncadd [#allocation4], %s856
          %s859 = sshll.u32 [#allocation5], 4
          %s860 = int_to_ptr.vmem [resolvable:$true] %s859
          %862 = dma.vmem_to_hbm [thread:$0]  %s860, 128, %s7, [#allocation4]
        $region64: #{tpu_custom_call.1} parent=47 // pred_fallthru
          _
        // Predicated region
        $region65: #{tpu_custom_call.1} parent=47 // pred_check
          %p863 = pneg %p190
        $region66: #{tpu_custom_call.1} parent=47 // pred_check_branch
          %865 = sbr.rel (%p863) target = $region68
        $region67: #{tpu_custom_call.1} parent=47 // pred_region
          %866 = dma.done [#allocation4], 128
        $region68: #{tpu_custom_call.1} parent=47 // pred_fallthru
          _
      $region48: #{tpu_custom_call.1} parent=5 // pred_fallthru
        _
      %p867 = scmp.le.s32.totalorder 2, %s15
      // Predicated region
      $region69: #{tpu_custom_call.1} parent=5 // pred_check
        %p868 = pneg %p867
      $region70: #{tpu_custom_call.1} parent=5 // pred_check_branch
        %870 = sbr.rel (%p868) target = $region72
      $region71: #{tpu_custom_call.1} parent=5 // pred_region
        %s871 = ssub.s32 %s15, 2
      $region72: #{tpu_custom_call.1} parent=5 // pred_fallthru
        _
    $region6: #{tpu_custom_call.1} parent=1 // loop_footer
      %s19 = sadd.s32 1, %s15
    $region7: #{tpu_custom_call.1} parent=1 // loop_footer_branch
      %14 = sbr.rel target = $region3
    $region8: #{tpu_custom_call.1} parent=1 // loop_exit
      _
    %872 = vsyncpa [#allocation3], 1
    %s873 = scalar_lea.sflag [#allocation3], 1
    %874 = vsyncpa %s873, 1
    %875 = vsyncpa [#allocation4], 1
    %s876 = scalar_lea.sflag [#allocation4], 1
    %877 = vsyncpa %s876, 1

</llo_original>
